<compile_context>
chip_gen: v7x
topology: tpu7x:2x2x1
jax: 0.10.0
libtpu: 0.0.40
codegen_flags: <defaults>
</compile_context>

<pallas_src>
import functools

import jax
import jax.numpy as jnp
from jax import lax
from jax.experimental import pallas as pl
from jax.experimental.pallas import tpu as pltpu

# ----------------------------------------------------------------------------- config
# Small, demo-sized analogue of PointToVoxel(vsize=[0.05]*3, range=[-1,-2,-2,1,2,2],
# max_num_voxels=2000, max_num_points_per_voxel=25).
VSIZE = (0.5, 0.5, 0.5)
COORS_RANGE = (-1.0, -1.0, -1.0, 1.0, 1.0, 1.0)
MAX_VOXELS = 128           # per batch element (multiple of 128 -> lane-dense, no padding)
MAX_POINTS_PER_VOXEL = 8
GRID_XYZ = tuple(
    int(round((COORS_RANGE[3 + i] - COORS_RANGE[i]) / VSIZE[i])) for i in range(3)
)  # (x, y, z) extents -> (4, 4, 4)
SPATIAL_SHAPE = (GRID_XYZ[2], GRID_XYZ[1], GRID_XYZ[0])  # spconv convention: (z, y, x)


# ------------------------------------------------------------------- Pallas hot path
def _encode_voxels_kernel(vox_ref, cnt_ref, out_ref):
    """out = raw_sum * P / clamp(count,1)^2  ==  sum(empty_mean_fill(vox), 1) / clamp(count,1)

    vox_ref: (P, C, TV)  zero-padded voxel point features, voxel axis on lanes
    cnt_ref: (1, TV)     number of real points per voxel (f32)
    out_ref: (C, TV)     encoded voxel features (lane-dense store)
    """
    p = vox_ref.shape[0]
    # Reduction over the leading (non-layout) axis: pure VPU adds, no XLU work.
    # Accumulate in f32 so bf16 voxel storage also works.
    acc = jnp.sum(vox_ref[...].astype(jnp.float32), axis=0)        # (C, TV)
    # Per-voxel scale on a single (1, TV) row; exact division is negligible work here
    # and keeps tight numerical parity with the torch reference.
    c = jnp.maximum(cnt_ref[...], 1.0)                              # (1, TV)
    scale = jnp.float32(p) / (c * c)                                # (1, TV)
    out_ref[...] = (acc * scale).astype(out_ref.dtype)


def encode_voxels_pallas(voxels_t, counts, *, vmem_budget_bytes=8 << 20, max_tile_v=2048):
    """voxels_t: (B, P, C, V) zero-padded point features; counts: (B, V) int32.

    Returns encoded features of shape (B, C, V).
    """
    B, P, C, V = voxels_t.shape
    itemsize = jnp.dtype(voxels_t.dtype).itemsize

    # Largest lane-dense (multiple-of-128) voxel tile fitting a conservative VMEM budget:
    # 2x pipeline buffers for the voxel block, the count row and the output block.
    # Budget sized against the v5e 16 MiB scoped-VMEM default; v6e/v7x have more room.
    per_voxel = 2 * (P * C * itemsize + 4 + C * itemsize)
    tile_v = max(128, min(max_tile_v, (vmem_budget_bytes // per_voxel) // 128 * 128))
    tile_v = min(tile_v, ((V + 127) // 128) * 128)

    v_pad = pl.cdiv(V, tile_v) * tile_v
    if v_pad != V:  # pad instead of asserting divisibility; padded voxels have count 0
        voxels_t = jnp.pad(voxels_t, ((0, 0), (0, 0), (0, 0), (0, v_pad - V)))
        counts = jnp.pad(counts, ((0, 0), (0, v_pad - V)))
    cnt = counts.reshape(B, 1, v_pad).astype(jnp.float32)

    out = pl.pallas_call(
        _encode_voxels_kernel,
        out_shape=jax.ShapeDtypeStruct((B, C, v_pad), voxels_t.dtype),
        grid=(B, v_pad // tile_v),
        in_specs=[
            pl.BlockSpec((None, P, C, tile_v), lambda b, j: (b, 0, 0, j)),
            pl.BlockSpec((None, 1, tile_v), lambda b, j: (b, 0, j)),
        ],
        out_specs=pl.BlockSpec((None, C, tile_v), lambda b, j: (b, 0, j)),
        # Every grid point owns a distinct output tile -> both axes independent; megacore
        # sharding on v7x gets >= B parallel steps.
        compiler_params=pltpu.CompilerParams(
            dimension_semantics=("parallel", "parallel")),
    )(voxels_t, cnt)
    return out[:, :, :V]


# ----------------------------------------------------------------- voxelization glue
def voxelize_jax(pc):
    """Fixed-shape, deterministic JAX stand-in for spconv's PointToVoxel.

    pc: (N, F) with xyz in the first 3 columns.
    Returns:
      voxels_t: (P, F, MAX_VOXELS)  zero-padded point features (voxel axis last = lanes)
      coords:   (MAX_VOXELS, 3) int32, (z, y, x) order
      counts:   (MAX_VOXELS,)   int32, points stored per voxel (0 for padding voxels)

    Note: the empty_mean fill is NOT applied here; the Pallas encoder reproduces the
    (empty_mean fill -> sum / clamp(count)) result in closed form from zero padding.
    """
    N, F = pc.shape
    lower = jnp.asarray(COORS_RANGE[:3], jnp.float32)
    vsize = jnp.asarray(VSIZE, jnp.float32)
    grid = jnp.asarray(GRID_XYZ, jnp.int32)
    gx, gy, gz = GRID_XYZ

    cxyz = jnp.floor((pc[:, :3] - lower) / vsize).astype(jnp.int32)
    in_range = jnp.all((cxyz >= 0) & (cxyz < grid), axis=1)

    flat = cxyz[:, 2] * (gy * gx) + cxyz[:, 1] * gx + cxyz[:, 0]
    big = gx * gy * gz
    flat = jnp.where(in_range, flat, big)

    order = jnp.argsort(flat, stable=True)       # stable: deterministic slot assignment
    flat_s = flat[order]
    pc_s = pc[order]
    czyx_s = cxyz[order][:, ::-1]                # (z, y, x)

    is_valid = flat_s < big
    is_new = jnp.concatenate([jnp.array([True]), flat_s[1:] != flat_s[:-1]]) & is_valid
    voxel_idx = jnp.cumsum(is_new.astype(jnp.int32)) - 1
    run_start = lax.cummax(jnp.where(is_new, jnp.arange(N), -1), axis=0)
    slot = jnp.arange(N) - run_start

    keep = is_valid & (voxel_idx < MAX_VOXELS) & (slot < MAX_POINTS_PER_VOXEL)
    vi = jnp.where(keep, voxel_idx, MAX_VOXELS)          # overflow row, discarded below
    pi = jnp.where(keep, slot, 0)

    # Scatter directly into (P, F, V+1): feature axis on sublanes, voxel axis on lanes,
    # so the encoder kernel needs no transpose pass over the big tensor.
    voxels_t = (
        jnp.zeros((MAX_POINTS_PER_VOXEL, F, MAX_VOXELS + 1), pc.dtype)
        .at[pi, :, vi].set(pc_s)[..., :MAX_VOXELS]
    )
    counts = (
        jnp.zeros((MAX_VOXELS + 1,), jnp.int32).at[vi].add(keep.astype(jnp.int32))[:MAX_VOXELS]
    )
    coords = jnp.zeros((MAX_VOXELS + 1, 3), jnp.int32).at[vi].set(czyx_s)[:MAX_VOXELS]
    return voxels_t, coords, counts


# ------------------------------------------------------------------ PC2Tensor forward
@functools.partial(jax.jit, static_argnames=("spatial_shape",))
def pc2tensor_forward(point_cloud_features, spatial_shape=SPATIAL_SHAPE):
    """point_cloud_features: (B, N, 3 + C) float32."""
    B = point_cloud_features.shape[0]

    # Batched voxelization: one fused sort/scatter program instead of B unrolled copies.
    voxels_t, coords, counts = jax.vmap(voxelize_jax)(point_cloud_features)
    # voxels_t: (B, P, F, V); coords: (B, V, 3); counts: (B, V)

    # --- hot path: VoxelEncoder.encode_voxels in Pallas (single pass over voxel data) ---
    features_t = encode_voxels_pallas(voxels_t, counts)                 # (B, F, V)
    # Final layout fix-up touches only the small (B*V, F) output, not the (V, P, F) data.
    features = jnp.transpose(features_t, (0, 2, 1)).reshape(B * MAX_VOXELS, -1)

    # --- TensorHelper.create_spconv_tensor: prepend batch index, concat over batch ---
    batch_idx = jnp.repeat(jnp.arange(B, dtype=jnp.int32), MAX_VOXELS)[:, None]
    indices = jnp.concatenate([batch_idx, coords.reshape(B * MAX_VOXELS, 3)], axis=1)

    # TODO(synk): spconv.SparseConvTensor has no JAX/Pallas equivalent; return its fields
    # (features, indices, spatial_shape, batch_size) as a dict; padding voxels have count 0.
    return {
        "features": features,
        "indices": indices,
        "num_points_per_voxel": counts.reshape(B * MAX_VOXELS),
        "spatial_shape": jnp.asarray(spatial_shape, jnp.int32),
        "batch_size": B,
    }


if __name__ == "__main__":
    key = jax.random.PRNGKey(0)
    B, N, F = 2, 128, 8          # 8 = xyz + 5 extra point features
    point_cloud_features = jax.random.uniform(
        key, (B, N, F), minval=-1.0, maxval=1.0, dtype=jnp.float32
    )

    out = pc2tensor_forward(point_cloud_features)
    jax.block_until_ready(out["features"])

    assert out["features"].shape == (B * MAX_VOXELS, F)
    assert out["indices"].shape == (B * MAX_VOXELS, 4)

    # Pure-JAX reference of the PyTorch pipeline:
    # PointToVoxel(empty_mean=True) fill, then sum(dim=1) / clamp_min(count, 1).
    vox_t, _, counts = jax.vmap(voxelize_jax)(point_cloud_features)
    vox = jnp.transpose(vox_t, (0, 3, 1, 2)).astype(jnp.float32)        # (B, V, P, F)
    cnt = counts.astype(jnp.float32)[..., None]                         # (B, V, 1)
    mean = vox.sum(axis=2) / jnp.maximum(cnt, 1.0)                      # (B, V, F)
    has_pt = jnp.arange(MAX_POINTS_PER_VOXEL)[None, None, :, None] < cnt[..., None]
    filled = jnp.where(has_pt, vox, mean[:, :, None, :])                # empty_mean fill
    ref = (filled.sum(axis=2) / jnp.maximum(cnt, 1.0)).reshape(B * MAX_VOXELS, F)

    assert jnp.allclose(out["features"], ref, rtol=1e-4, atol=1e-5)
    print("KERNEL_OK")
</pallas_src>

<mosaic_0001>
module attributes {stable_mosaic.version = 11 : i64} {
  func.func private @main(%arg0: i32) attributes {dimension_semantics = [#tpu.dimension_semantics<core_parallel>], iteration_bounds = array<i64: 2>, tpu.core_type = #tpu.core_type<sc_scalar_subcore>, window_params = []} {
    return
  }
}

module attributes {stable_mosaic.version = 11 : i64} {
  func.func private @main(%arg0: i32) attributes {dimension_semantics = [#tpu.dimension_semantics<core_parallel>], iteration_bounds = array<i64: 2>, tpu.core_type = #tpu.core_type<sc_scalar_subcore>, window_params = []} {
    return
  }
}

module attributes {stable_mosaic.version = 11 : i64} {
  func.func @_encode_voxels_kernel(%arg0: i32, %arg1: i32, %arg2: memref<1x8x8x128xf32, #tpu.memory_space<vmem>>, %arg3: memref<1x1x128xf32, #tpu.memory_space<vmem>>, %arg4: memref<1x8x128xf32, #tpu.memory_space<vmem>>) attributes {dimension_semantics = [#tpu.dimension_semantics<parallel>, #tpu.dimension_semantics<parallel>], iteration_bounds = array<i64: 2, 1>, scalar_prefetch = 0 : i64, scratch_operands = 0 : i64, tpu.core_type = #tpu.core_type<tc>, window_params = [{transform_indices = @transform_0, window_bounds = array<i64: 1, 8, 8, 128>}, {transform_indices = @transform_1, window_bounds = array<i64: 1, 1, 128>}, {transform_indices = @transform_2, window_bounds = array<i64: 1, 8, 128>}]} {
    %c0 = arith.constant 0 : index
    %c0_0 = arith.constant 0 : index
    %c0_1 = arith.constant 0 : index
    %c0_2 = arith.constant 0 : index
    %0 = vector.load %arg2[%c0, %c0_0, %c0_1, %c0_2] : memref<1x8x8x128xf32, #tpu.memory_space<vmem>>, vector<1x8x8x128xf32>
    %1 = vector.shape_cast %0 : vector<1x8x8x128xf32> to vector<8x8x128xf32>
    %cst = arith.constant dense<0.000000e+00> : vector<8x128xf32>
    %2 = vector.multi_reduction <add>, %1, %cst [0] : vector<8x8x128xf32> to vector<8x128xf32>
    %c0_3 = arith.constant 0 : index
    %c0_4 = arith.constant 0 : index
    %c0_5 = arith.constant 0 : index
    %3 = vector.load %arg3[%c0_3, %c0_4, %c0_5] : memref<1x1x128xf32, #tpu.memory_space<vmem>>, vector<1x1x128xf32>
    %4 = vector.shape_cast %3 : vector<1x1x128xf32> to vector<1x128xf32>
    %cst_6 = arith.constant 1.000000e+00 : f32
    %5 = vector.broadcast %cst_6 : f32 to vector<1x128xf32>
    %6 = arith.maximumf %4, %5 : vector<1x128xf32>
    %7 = arith.mulf %6, %6 : vector<1x128xf32>
    %cst_7 = arith.constant 8.000000e+00 : f32
    %8 = vector.broadcast %cst_7 : f32 to vector<1x128xf32>
    %9 = arith.divf %8, %7 : vector<1x128xf32>
    %10 = vector.broadcast %9 : vector<1x128xf32> to vector<8x128xf32>
    %11 = arith.mulf %2, %10 : vector<8x128xf32>
    %c0_8 = arith.constant 0 : index
    %c0_9 = arith.constant 0 : index
    %c0_10 = arith.constant 0 : index
    %12 = vector.load %arg4[%c0_8, %c0_9, %c0_10] : memref<1x8x128xf32, #tpu.memory_space<vmem>>, vector<1x8x128xf32>
    %13 = vector.shape_cast %12 : vector<1x8x128xf32> to vector<8x128xf32>
    %14 = vector.shape_cast %11 : vector<8x128xf32> to vector<1x8x128xf32>
    tpu.vector_store %arg4[%c0_8, %c0_9, %c0_10], %14 {strides = array<i32>} : memref<1x8x128xf32, #tpu.memory_space<vmem>>, vector<1x8x128xf32>,
    return
  }
  func.func @transform_0(%arg0: i32, %arg1: i32) -> (i32, i32, i32, i32) {
    %c0_i32 = arith.constant 0 : i32
    %c0_i32_0 = arith.constant 0 : i32
    %c0_i32_1 = arith.constant 0 : i32
    return %arg0, %c0_i32, %c0_i32_0, %arg1 : i32, i32, i32, i32
  }
  func.func @transform_1(%arg0: i32, %arg1: i32) -> (i32, i32, i32) {
    %c0_i32 = arith.constant 0 : i32
    %c0_i32_0 = arith.constant 0 : i32
    return %arg0, %c0_i32, %arg1 : i32, i32, i32
  }
  func.func @transform_2(%arg0: i32, %arg1: i32) -> (i32, i32, i32) {
    %c0_i32 = arith.constant 0 : i32
    %c0_i32_0 = arith.constant 0 : i32
    return %arg0, %c0_i32, %arg1 : i32, i32, i32
  }
}

</mosaic_0001>

<llo_original>
// kernel: pc2tensor_forward.1
$region0: #{pc2tensor_forward.1}
  #allocation0 [shape = 'u32[]', space=smem, size = 0x4, offset = 0x4, fixed_abs, tag = 'smem constant byte address 0x4 - core index']
  #allocation1 [shape = 'u32[144,128]{1,0:T(1,128)}', space=vmem, size = 0x12000, scoped, tag = 'internal scratch']
  %s0 = inlined_call_operand.vmem [shape: f32[2,8,8,128], index: 0, kind: input, shape index: {}]
  %s1 = inlined_call_operand.vmem [shape: f32[2,1,128], index: 1, kind: input, shape index: {}]
  %s2 = inlined_call_operand.hbm [shape: f32[2,8,128], index: 2, kind: output, shape index: {}]
  %s3 = sld [smem:[#allocation0]]
  $region41: #{pc2tensor_forward.1} parent=0
    _
  %s5 = ssub.s32 1, %s3
  %s6 = scalar_select 0, %s5, %s3
  $region1: #{pc2tensor_forward.1} parent=0
    #allocation2 [shape = 'u8[8192]{0}', space=vmem, size = 0x2000, scoped, tag = 'output window, operand 0']
    #allocation3 [shape = 's32[2]{0}', space=sflag, size = 0x8, scoped, tag = 'scoped memory for pc2tensor_forward.1']
    %7 = vsyncpa [#allocation3], 0
    %s8 = scalar_lea.sflag [#allocation3], 1
    %9 = vsyncpa %s8, 0
    loop: start=0, step=1, limit=4
    $region2: #{pc2tensor_forward.1} parent=1 // loop_pre_header
      _
    $region3: #{pc2tensor_forward.1} parent=1 // loop_header
      %s11 = sphi 0, %s15
      %p12 = scmp.ge.s32.totalorder %s11, 4
      %s18 = sphi 0, %s30
      %s19 = sphi 0, %s26
      %s20 = sphi 0, %s18
      %s21 = sphi 0, %s19
      %s22 = sphi 0, %s20
      %s23 = sphi 0, %s21
      %s35 = sphi 0, %s37
      %s38 = sphi 0, %s35
      %s39 = sphi 0, %s38
      %s55 = sphi 0, %s39
      %s63 = sphi 0, %s65
      %s66 = sphi 0, %s63
      %s67 = sphi 0, %s66
      %s83 = sphi 0, %s67
      %s91 = sphi 0, %s93
      %s94 = sphi 0, %s91
      %s95 = sphi 0, %s94
      %s111 = sphi 0, %s95
    $region4: #{pc2tensor_forward.1} parent=1 // loop_header_branch
      %14 = sbr.rel (%p12) target = $region8
    $region5: #{pc2tensor_forward.1} parent=1 // loop_body
      %s16 = ssub.s32 %s11, 1
      %s17 = ssub.s32 %s11, 2
      %s24 = sadd.s32 1, %s19
      %p25 = scmp.ge.s32.totalorder %s24, 1
      %s26 = scalar_select %p25, 0, %s24
      %s27 = sadd.s32 1, %s18
      %s28 = scalar_select %p25, %s27, %s18
      %p29 = scmp.ge.s32.totalorder %s28, 2
      %s30 = scalar_select %p29, 0, %s28
      %s31 = ssub.s32 %s18, %s30
      %s32 = ssub.s32 %s19, %s26
      %s33 = sor.u32 %s31, %s32
      %p34 = scmp.eq.s32.totalorder %s33, 0
      %s36 = sadd.s32 %s35, 1
      %s37 = scalar_select %p34, %s35, %s36
      %p40 = pneg %p34
      %p41 = scmp.eq.s32.totalorder %s11, 1
      %p42 = por %p40, %p41
      %p43 = scmp.ne.s32.totalorder %s35, %s38
      %p44 = scmp.eq.s32.totalorder %s11, 0
      %p45 = por %p43, %p44
      %p46 = scmp.ne.s32.totalorder %s35, %s38
      %p47 = scmp.eq.s32.totalorder %s16, 1
      %p48 = por %p46, %p47
      %p49 = scmp.ne.s32.totalorder %s38, %s39
      %p50 = scmp.eq.s32.totalorder %s16, 0
      %p51 = por %p49, %p50
      %p52 = scmp.ne.s32.totalorder %s38, %s39
      %p53 = scmp.eq.s32.totalorder %s17, 1
      %p54 = por %p52, %p53
      %p56 = scmp.ne.s32.totalorder %s39, %s55
      %p57 = scmp.eq.s32.totalorder %s17, 0
      %p58 = por %p56, %p57
      %s59 = ssub.s32 %s18, %s30
      %s60 = ssub.s32 %s19, %s26
      %s61 = sor.u32 %s59, %s60
      %p62 = scmp.eq.s32.totalorder %s61, 0
      %s64 = sadd.s32 %s63, 1
      %s65 = scalar_select %p62, %s63, %s64
      %p68 = pneg %p62
      %p69 = scmp.eq.s32.totalorder %s11, 1
      %p70 = por %p68, %p69
      %p71 = scmp.ne.s32.totalorder %s63, %s66
      %p72 = scmp.eq.s32.totalorder %s11, 0
      %p73 = por %p71, %p72
      %p74 = scmp.ne.s32.totalorder %s63, %s66
      %p75 = scmp.eq.s32.totalorder %s16, 1
      %p76 = por %p74, %p75
      %p77 = scmp.ne.s32.totalorder %s66, %s67
      %p78 = scmp.eq.s32.totalorder %s16, 0
      %p79 = por %p77, %p78
      %p80 = scmp.ne.s32.totalorder %s66, %s67
      %p81 = scmp.eq.s32.totalorder %s17, 1
      %p82 = por %p80, %p81
      %p84 = scmp.ne.s32.totalorder %s67, %s83
      %p85 = scmp.eq.s32.totalorder %s17, 0
      %p86 = por %p84, %p85
      %s87 = ssub.s32 %s18, %s30
      %s88 = ssub.s32 %s19, %s26
      %s89 = sor.u32 %s87, %s88
      %p90 = scmp.eq.s32.totalorder %s89, 0
      %s92 = sadd.s32 %s91, 1
      %s93 = scalar_select %p90, %s91, %s92
      %p96 = pneg %p90
      %p97 = scmp.eq.s32.totalorder %s11, 1
      %p98 = por %p96, %p97
      %p99 = scmp.ne.s32.totalorder %s91, %s94
      %p100 = scmp.eq.s32.totalorder %s11, 0
      %p101 = por %p99, %p100
      %p102 = scmp.ne.s32.totalorder %s91, %s94
      %p103 = scmp.eq.s32.totalorder %s16, 1
      %p104 = por %p102, %p103
      %p105 = scmp.ne.s32.totalorder %s94, %s95
      %p106 = scmp.eq.s32.totalorder %s16, 0
      %p107 = por %p105, %p106
      %p108 = scmp.ne.s32.totalorder %s94, %s95
      %p109 = scmp.eq.s32.totalorder %s17, 1
      %p110 = por %p108, %p109
      %p112 = scmp.ne.s32.totalorder %s95, %s111
      %p113 = scmp.eq.s32.totalorder %s17, 0
      %p114 = por %p112, %p113
      %p115 = scmp.le.s32.totalorder 1, %s11
      %p116 = scmp.lt.s32.totalorder %s11, 3
      %p117 = pnand %p115, %p116
      %p118 = pneg %p117
      // Predicated region
      $region9: #{pc2tensor_forward.1} parent=5 // pred_check
        _
      $region10: #{pc2tensor_forward.1} parent=5 // pred_check_branch
        %120 = sbr.rel (%p117) target = $region12
      $region11: #{pc2tensor_forward.1} parent=5 // pred_region
        %s121 = ssub.s32 %s11, 1
      $region12: #{pc2tensor_forward.1} parent=5 // pred_fallthru
        _
      %p122 = scmp.lt.s32.totalorder %s11, 2
      // Predicated region
      $region13: #{pc2tensor_forward.1} parent=5 // pred_check
        %p123 = pneg %p122
      $region14: #{pc2tensor_forward.1} parent=5 // pred_check_branch
        %125 = sbr.rel (%p123) target = $region16
      $region15: #{pc2tensor_forward.1} parent=5 // pred_region
        // Predicated region
        $region17: #{pc2tensor_forward.1} parent=15 // pred_check
          %p126 = pneg %p45
        $region18: #{pc2tensor_forward.1} parent=15 // pred_check_branch
          %128 = sbr.rel (%p126) target = $region20
        $region19: #{pc2tensor_forward.1} parent=15 // pred_region
          %p129 = scmp.lt.s32.totalorder %s18, 1
          %s130 = scalar_select %p129, %s18, 1
          %p131 = scmp.lt.s32.totalorder %s19, 0
          %s132 = scalar_select %p131, %s19, 0
          %s133 = smul.addr %s130, 8
          %s134 = sadd.s32 %s132, %s133
          %s135 = smul.addr %s134, 8
          %s136 = scalar_lea.vmem %s0, %s135
        $region20: #{pc2tensor_forward.1} parent=15 // pred_fallthru
          _
        // Predicated region
        $region21: #{pc2tensor_forward.1} parent=15 // pred_check
          %p137 = pneg %p73
        $region22: #{pc2tensor_forward.1} parent=15 // pred_check_branch
          %139 = sbr.rel (%p137) target = $region24
        $region23: #{pc2tensor_forward.1} parent=15 // pred_region
          %p140 = scmp.lt.s32.totalorder %s18, 1
          %s141 = scalar_select %p140, %s18, 1
          %p142 = scmp.lt.s32.totalorder %s19, 0
          %s143 = scalar_select %p142, %s19, 0
          %s144 = sadd.s32 %s143, %s141
          %s145 = scalar_lea.vmem %s1, %s144
        $region24: #{pc2tensor_forward.1} parent=15 // pred_fallthru
          _
      $region16: #{pc2tensor_forward.1} parent=5 // pred_fallthru
        _
      %p146 = scmp.le.s32.totalorder 1, %s11
      %p147 = scmp.lt.s32.totalorder %s11, 3
      %p148 = pnand %p146, %p147
      %p149 = pneg %p148
      // Predicated region
      $region25: #{pc2tensor_forward.1} parent=5 // pred_check
        _
      $region26: #{pc2tensor_forward.1} parent=5 // pred_check_branch
        %151 = sbr.rel (%p148) target = $region28
      $region27: #{pc2tensor_forward.1} parent=5 // pred_region
        %s152 = ssub.s32 %s11, 1
        %p153 = scmp.lt.s32.totalorder %s20, 1
        %s154 = scalar_select %p153, %s20, 1
        %p155 = scmp.lt.s32.totalorder %s21, 0
        %s156 = scalar_select %p155, %s21, 0
        %s157 = smul.addr %s154, 8
        %s158 = sadd.s32 %s156, %s157
        %s159 = smul.addr %s158, 8
        %s160 = scalar_lea.vmem %s0, %s159
        %p161 = pneg %p51
        %p162 = pneg %p48
        %p163 = scmp.lt.s32.totalorder %s20, 1
        %s164 = scalar_select %p163, %s20, 1
        %p165 = scmp.lt.s32.totalorder %s21, 0
        %s166 = scalar_select %p165, %s21, 0
        %s167 = sadd.s32 %s166, %s164
        %s168 = scalar_lea.vmem %s1, %s167
        %p169 = pneg %p79
        %p170 = pneg %p76
        %p171 = pneg %p107
        %p172 = pneg %p104
        %s173 = sand.u32 %s94, 1
        %s174 = scalar_lea.sflag [#allocation3], %s173
        %s175 = sand.u32 %s94, 1
        %s176 = smul.addr %s175, 8
        %s177 = scalar_lea.vmem [#allocation2], %s176
        %p178 = scmp.lt.s32.totalorder %s20, 1
        %s179 = scalar_select %p178, %s20, 1
        %p180 = scmp.lt.s32.totalorder %s21, 0
        %s181 = scalar_select %p180, %s21, 0
        %s182 = smul.addr %s179, 8
        %s183 = sadd.s32 %s181, %s182
        %s184 = smul.addr %s183, 8
        %s185 = scalar_lea.vmem %s0, %s184
        %p186 = scmp.lt.s32.totalorder %s20, 1
        %s187 = scalar_select %p186, %s20, 1
        %p188 = scmp.lt.s32.totalorder %s21, 0
        %s189 = scalar_select %p188, %s21, 0
        %s190 = sadd.s32 %s189, %s187
        %s191 = scalar_lea.vmem %s1, %s190
        %v192 = vld [vmem:[%s185] sm:$0xff]
        %v193 = vld [vmem:[%s185 + $0x8] sm:$0xff]
        %v194 = vld [vmem:[%s185 + $0x10] sm:$0xff]
        %v195 = vld [vmem:[%s185 + $0x18] sm:$0xff]
        %v196 = vld [vmem:[%s185 + $0x20] sm:$0xff]
        %v197 = vld [vmem:[%s185 + $0x28] sm:$0xff]
        %v198 = vld [vmem:[%s185 + $0x30] sm:$0xff]
        %v199 = vld [vmem:[%s185 + $0x38] sm:$0xff]
        %v200 = vadd.f32 %v192, %v193
        %v201 = vadd.f32 %v200, %v194
        %v202 = vadd.f32 %v201, %v195
        %v203 = vadd.f32 %v202, %v196
        %v204 = vadd.f32 %v203, %v197
        %v205 = vadd.f32 %v204, %v198
        %v206 = vadd.f32 %v205, %v199
        %v207 = vld [vmem:[%s191] sm:$0x1]
        %v208 = vmax.f32 %v207, 1.0
        %v209 = vmul.f32 %v208, %v208
        %v210 = vrcp.pop %v209
        %v211 = vmul.f32 8.0, %v210
        %v213 = vlaneseq
        %v214 = vshrl.u32 %v213, 7
        %v215 = vsub.s32 0, %v214
        %v216 = vrot.slane %v211, %v215
        %v218 = vmul.f32 %v206, %v216
        %219 = vst [vmem:[%s177] sm:$0xff] %v218
        %s220 = sand.u32 %s94, 1
        %s221 = scalar_lea.sflag [#allocation3], %s220
        %s222 = sand.u32 %s94, 1
        %s223 = smul.addr %s222, 8
        %s224 = scalar_lea.vmem [#allocation2], %s223
        // Predicated region
        $region29: #{pc2tensor_forward.1} parent=27 // pred_check
          %p225 = pneg %p104
        $region30: #{pc2tensor_forward.1} parent=27 // pred_check_branch
          %227 = sbr.rel (%p225) target = $region32
        $region31: #{pc2tensor_forward.1} parent=27 // pred_region
          %s229 = ssub.s32 128, 128
          %230 = vsyncadd %s221, %s229
          %s231 = sadd.s32 %s21, %s20
          %s232 = smul.addr %s231, 128
          %s233 = scalar_lea.hbm %s2, %s232
          %s235 = sshll.u32 %s224, 4
          %s236 = int_to_ptr.vmem [resolvable:$true] %s235
          %238 = dma.vmem_to_hbm [thread:$0]  %s236, 128, %s233, %s221
        $region32: #{pc2tensor_forward.1} parent=27 // pred_fallthru
          _
      $region28: #{pc2tensor_forward.1} parent=5 // pred_fallthru
        _
      %p239 = scmp.le.s32.totalorder 2, %s11
      // Predicated region
      $region33: #{pc2tensor_forward.1} parent=5 // pred_check
        %p240 = pneg %p239
      $region34: #{pc2tensor_forward.1} parent=5 // pred_check_branch
        %242 = sbr.rel (%p240) target = $region36
      $region35: #{pc2tensor_forward.1} parent=5 // pred_region
        %s243 = ssub.s32 %s11, 2
        // Predicated region
        $region37: #{pc2tensor_forward.1} parent=35 // pred_check
          %p244 = pneg %p110
        $region38: #{pc2tensor_forward.1} parent=35 // pred_check_branch
          %246 = sbr.rel (%p244) target = $region40
        $region39: #{pc2tensor_forward.1} parent=35 // pred_region
          %s247 = sand.u32 %s95, 1
          %s248 = scalar_lea.sflag [#allocation3], %s247
          %s249 = sand.u32 %s95, 1
          %s250 = smul.addr %s249, 8
          %s251 = scalar_lea.vmem [#allocation2], %s250
          %252 = dma.done %s248, 128
        $region40: #{pc2tensor_forward.1} parent=35 // pred_fallthru
          _
      $region36: #{pc2tensor_forward.1} parent=5 // pred_fallthru
        _
    $region6: #{pc2tensor_forward.1} parent=1 // loop_footer
      %s15 = sadd.s32 1, %s11
    $region7: #{pc2tensor_forward.1} parent=1 // loop_footer_branch
      %10 = sbr.rel target = $region3
    $region8: #{pc2tensor_forward.1} parent=1 // loop_exit
      _
    %253 = vsyncpa [#allocation3], 1
    %s254 = scalar_lea.sflag [#allocation3], 1
    %255 = vsyncpa %s254, 1

</llo_original>
